<compile_context>
chip_gen: v5e
topology: v5e:2x2
jax: 0.10.0
libtpu: 0.0.40
codegen_flags: <defaults>
</compile_context>

<pallas_src>
import numpy as np
import jax
import jax.numpy as jnp
from jax.experimental import pallas as pl
from jax.experimental.pallas import tpu as pltpu

LEAKY_SLOPE = 0.01
# F.rrelu default (lower=1/8, upper=1/3); eval mode uses the fixed mean slope.
# TODO(synk): training-mode rrelu needs per-element random slopes (pltpu.prng_*).
RRELU_SLOPE = (0.125 + 1.0 / 3.0) / 2.0
HIDDEN = 128
OUT_PAD = 128  # lane-dense padded output width


def dqn_mlp_kernel(x_ref, w0_ref, w_in_ref, w3_ref, b_ref, o_ref):
    # Matmul operands in bf16 (native MXU passes); accumulate + act in f32.
    x = x_ref[...].astype(jnp.bfloat16)

    # Layer 0: Linear + leaky_relu
    h = jnp.dot(x, w0_ref[...], preferred_element_type=jnp.float32) + b_ref[0:1, :]
    h = jnp.where(h > 0, h, LEAKY_SLOPE * h)

    # Layer 1: Linear + rrelu (eval-mode deterministic slope)
    h = jnp.dot(h.astype(jnp.bfloat16), w_in_ref[0],
                preferred_element_type=jnp.float32) + b_ref[1:2, :]
    h = jnp.where(h > 0, h, RRELU_SLOPE * h)

    # Layer 2: Linear + relu
    h = jnp.dot(h.astype(jnp.bfloat16), w_in_ref[1],
                preferred_element_type=jnp.float32) + b_ref[2:3, :]
    h = jnp.maximum(h, 0.0)

    # Output layer: Linear into a lane-dense 128-wide padded block.
    o_ref[...] = (jnp.dot(h.astype(jnp.bfloat16), w3_ref[...],
                          preferred_element_type=jnp.float32)
                  + b_ref[3:4, :]).astype(o_ref.dtype)


def _pick_batch_tile(B):
    # Large tiles amortize the per-grid-step overhead; the whole network is
    # tiny so VMEM stays comfortable even at TB=1024.
    if B >= 1024:
        return 1024
    if B >= 512:
        return 512
    if B >= 256:
        return 256
    return max(8, ((B + 7) // 8) * 8)


def dqn_forward(x, params, n_actions):
    """x: (B, n_obs) f32.
    params = (w0 bf16 (n_obs,128), w_inner bf16 (2,128,128),
              w3_padded bf16 (128,128), biases f32 (4,128))."""
    w0, w_inner, w3p, b = params
    B, n_obs = x.shape

    TB = _pick_batch_tile(B)
    B_pad = ((B + TB - 1) // TB) * TB
    if B_pad != B:
        x = jnp.pad(x, ((0, B_pad - B), (0, 0)))
    num_tiles = B_pad // TB

    flops = 2 * B_pad * (n_obs * HIDDEN + 2 * HIDDEN * HIDDEN + HIDDEN * OUT_PAD)
    bytes_accessed = (x.size * 4 + w0.size * 2 + w_inner.size * 2
                      + w3p.size * 2 + b.size * 4 + B_pad * OUT_PAD * 4)

    out = pl.pallas_call(
        dqn_mlp_kernel,
        out_shape=jax.ShapeDtypeStruct((B_pad, OUT_PAD), jnp.float32),
        grid=(num_tiles,),
        in_specs=[
            # activations stream per batch tile
            pl.BlockSpec((TB, n_obs), lambda i: (i, 0)),
            # weights/biases: same block for every tile -> fetched once and
            # kept VMEM-resident across the whole grid
            pl.BlockSpec(w0.shape, lambda i: (0, 0)),
            pl.BlockSpec(w_inner.shape, lambda i: (0, 0, 0)),
            pl.BlockSpec(w3p.shape, lambda i: (0, 0)),
            pl.BlockSpec(b.shape, lambda i: (0, 0)),
        ],
        out_specs=pl.BlockSpec((TB, OUT_PAD), lambda i: (i, 0)),
        compiler_params=pltpu.CompilerParams(
            dimension_semantics=("parallel",)),
        cost_estimate=pl.CostEstimate(
            flops=flops, transcendentals=0, bytes_accessed=bytes_accessed),
    )(x, w0, w_inner, w3p, b)

    return out[:B, :n_actions]


def xavier_uniform(key, fan_in, fan_out, dtype=jnp.float32):
    # Matches nn.init.xavier_uniform_ on a (out, in) weight; we directly
    # generate the transposed (in, out) layout (same distribution).
    bound = float(np.sqrt(6.0 / (fan_in + fan_out)))
    w = jax.random.uniform(key, (fan_in, fan_out), jnp.float32,
                           minval=-bound, maxval=bound)
    return w.astype(dtype)


def init_params(key, n_observations, n_actions):
    k0, k1, k2, k3 = jax.random.split(key, 4)
    w0 = xavier_uniform(k0, n_observations, HIDDEN, jnp.bfloat16)
    w1 = xavier_uniform(k1, HIDDEN, HIDDEN, jnp.bfloat16)
    w2 = xavier_uniform(k2, HIDDEN, HIDDEN, jnp.bfloat16)
    w3 = xavier_uniform(k3, HIDDEN, n_actions, jnp.bfloat16)

    w_inner = jnp.stack([w1, w2], axis=0)                       # (2, 128, 128)
    w3p = jnp.zeros((HIDDEN, OUT_PAD), jnp.bfloat16).at[:, :n_actions].set(w3)

    # All four biases stacked (4, 128); bias.data.fill_(0.01).  Padded output
    # lanes stay 0 (they are sliced away outside the kernel).
    b = jnp.zeros((4, OUT_PAD), jnp.float32)
    b = b.at[0:3, :].set(0.01)
    b = b.at[3, :n_actions].set(0.01)
    return (w0, w_inner, w3p, b)


def reference_forward(x, params, n_actions):
    """Pure-JAX reference following the exact same quantization path."""
    w0, w_inner, w3p, b = params
    h = jnp.dot(x.astype(jnp.bfloat16), w0,
                preferred_element_type=jnp.float32) + b[0:1, :]
    h = jnp.where(h > 0, h, LEAKY_SLOPE * h)
    h = jnp.dot(h.astype(jnp.bfloat16), w_inner[0],
                preferred_element_type=jnp.float32) + b[1:2, :]
    h = jnp.where(h > 0, h, RRELU_SLOPE * h)
    h = jnp.dot(h.astype(jnp.bfloat16), w_inner[1],
                preferred_element_type=jnp.float32) + b[2:3, :]
    h = jnp.maximum(h, 0.0)
    out = jnp.dot(h.astype(jnp.bfloat16), w3p,
                  preferred_element_type=jnp.float32) + b[3:4, :]
    return out[:, :n_actions]


if __name__ == "__main__":
    key = jax.random.PRNGKey(0)
    k_x, k_p = jax.random.split(key)

    batch = 8
    n_observations = 8
    n_actions = 4

    x = jax.random.normal(k_x, (batch, n_observations), jnp.float32)
    params = init_params(k_p, n_observations, n_actions)

    out = dqn_forward(x, params, n_actions)
    out = jax.block_until_ready(out)
    assert out.shape == (batch, n_actions)

    ref = reference_forward(x, params, n_actions)
    np.testing.assert_allclose(np.asarray(out), np.asarray(ref),
                               rtol=1e-3, atol=1e-3)

    print("KERNEL_OK")
</pallas_src>

<mosaic_0001>
module attributes {stable_mosaic.version = 11 : i64} {
  func.func @dqn_mlp_kernel(%arg0: i32, %arg1: memref<8x8xf32, #tpu.memory_space<vmem>>, %arg2: memref<8x128xbf16, #tpu.memory_space<vmem>>, %arg3: memref<2x128x128xbf16, #tpu.memory_space<vmem>>, %arg4: memref<128x128xbf16, #tpu.memory_space<vmem>>, %arg5: memref<4x128xf32, #tpu.memory_space<vmem>>, %arg6: memref<8x128xf32, #tpu.memory_space<vmem>>) attributes {dimension_semantics = [#tpu.dimension_semantics<parallel>], iteration_bounds = array<i64: 1>, scalar_prefetch = 0 : i64, scratch_operands = 0 : i64, tpu.core_type = #tpu.core_type<tc>, window_params = [{transform_indices = @transform_0, window_bounds = array<i64: 8, 8>}, {pipeline_mode = #tpu.pipeline_mode<synchronous>, transform_indices = @transform_1, window_bounds = array<i64: 8, 128>}, {pipeline_mode = #tpu.pipeline_mode<synchronous>, transform_indices = @transform_2, window_bounds = array<i64: 2, 128, 128>}, {pipeline_mode = #tpu.pipeline_mode<synchronous>, transform_indices = @transform_3, window_bounds = array<i64: 128, 128>}, {pipeline_mode = #tpu.pipeline_mode<synchronous>, transform_indices = @transform_4, window_bounds = array<i64: 4, 128>}, {transform_indices = @transform_5, window_bounds = array<i64: 8, 128>}]} {
    %c0 = arith.constant 0 : index
    %c0_0 = arith.constant 0 : index
    %0 = vector.load %arg1[%c0, %c0_0] : memref<8x8xf32, #tpu.memory_space<vmem>>, vector<8x8xf32>
    %1 = arith.truncf %0 : vector<8x8xf32> to vector<8x8xbf16>
    %c0_1 = arith.constant 0 : index
    %c0_2 = arith.constant 0 : index
    %2 = vector.load %arg2[%c0_1, %c0_2] : memref<8x128xbf16, #tpu.memory_space<vmem>>, vector<8x128xbf16>
    %cst = arith.constant dense<0.000000e+00> : vector<8x128xf32>
    %3 = tpu.matmul %1, %2, %cst {dimension_numbers = #tpu.dot_dimension_numbers<[1], [0], [0], [1], [0, 0, 1, 1], [], []>} : vector<8x8xbf16>, vector<8x128xbf16>, vector<8x128xf32> -> vector<8x128xf32>
    %c0_3 = arith.constant 0 : index
    %c0_4 = arith.constant 0 : index
    %4 = vector.load %arg5[%c0_3, %c0_4] : memref<4x128xf32, #tpu.memory_space<vmem>>, vector<1x128xf32>
    %5 = vector.broadcast %4 : vector<1x128xf32> to vector<8x128xf32>
    %6 = arith.addf %3, %5 : vector<8x128xf32>
    %cst_5 = arith.constant 0.000000e+00 : f32
    %7 = vector.broadcast %cst_5 : f32 to vector<8x128xf32>
    %8 = arith.cmpf ogt, %6, %7 : vector<8x128xf32>
    %cst_6 = arith.constant 0.00999999977 : f32
    %9 = vector.broadcast %cst_6 : f32 to vector<8x128xf32>
    %10 = arith.mulf %9, %6 : vector<8x128xf32>
    %11 = arith.select %8, %6, %10 : vector<8x128xi1>, vector<8x128xf32>
    %12 = arith.truncf %11 : vector<8x128xf32> to vector<8x128xbf16>
    %c0_7 = arith.constant 0 : index
    %c0_8 = arith.constant 0 : index
    %c0_9 = arith.constant 0 : index
    %13 = vector.load %arg3[%c0_7, %c0_8, %c0_9] : memref<2x128x128xbf16, #tpu.memory_space<vmem>>, vector<1x128x128xbf16>
    %14 = vector.shape_cast %13 : vector<1x128x128xbf16> to vector<128x128xbf16>
    %cst_10 = arith.constant dense<0.000000e+00> : vector<8x128xf32>
    %15 = tpu.matmul %12, %14, %cst_10 {dimension_numbers = #tpu.dot_dimension_numbers<[1], [0], [0], [1], [0, 0, 1, 1], [], []>} : vector<8x128xbf16>, vector<128x128xbf16>, vector<8x128xf32> -> vector<8x128xf32>
    %c1 = arith.constant 1 : index
    %c0_11 = arith.constant 0 : index
    %16 = vector.load %arg5[%c1, %c0_11] : memref<4x128xf32, #tpu.memory_space<vmem>>, vector<1x128xf32>
    %17 = vector.broadcast %16 : vector<1x128xf32> to vector<8x128xf32>
    %18 = arith.addf %15, %17 : vector<8x128xf32>
    %cst_12 = arith.constant 0.000000e+00 : f32
    %19 = vector.broadcast %cst_12 : f32 to vector<8x128xf32>
    %20 = arith.cmpf ogt, %18, %19 : vector<8x128xf32>
    %cst_13 = arith.constant 0.229166672 : f32
    %21 = vector.broadcast %cst_13 : f32 to vector<8x128xf32>
    %22 = arith.mulf %21, %18 : vector<8x128xf32>
    %23 = arith.select %20, %18, %22 : vector<8x128xi1>, vector<8x128xf32>
    %24 = arith.truncf %23 : vector<8x128xf32> to vector<8x128xbf16>
    %c1_14 = arith.constant 1 : index
    %c0_15 = arith.constant 0 : index
    %c0_16 = arith.constant 0 : index
    %25 = vector.load %arg3[%c1_14, %c0_15, %c0_16] : memref<2x128x128xbf16, #tpu.memory_space<vmem>>, vector<1x128x128xbf16>
    %26 = vector.shape_cast %25 : vector<1x128x128xbf16> to vector<128x128xbf16>
    %cst_17 = arith.constant dense<0.000000e+00> : vector<8x128xf32>
    %27 = tpu.matmul %24, %26, %cst_17 {dimension_numbers = #tpu.dot_dimension_numbers<[1], [0], [0], [1], [0, 0, 1, 1], [], []>} : vector<8x128xbf16>, vector<128x128xbf16>, vector<8x128xf32> -> vector<8x128xf32>
    %c2 = arith.constant 2 : index
    %c0_18 = arith.constant 0 : index
    %28 = vector.load %arg5[%c2, %c0_18] : memref<4x128xf32, #tpu.memory_space<vmem>>, vector<1x128xf32>
    %29 = vector.broadcast %28 : vector<1x128xf32> to vector<8x128xf32>
    %30 = arith.addf %27, %29 : vector<8x128xf32>
    %cst_19 = arith.constant 0.000000e+00 : f32
    %31 = vector.broadcast %cst_19 : f32 to vector<8x128xf32>
    %32 = arith.maximumf %30, %31 : vector<8x128xf32>
    %33 = arith.truncf %32 : vector<8x128xf32> to vector<8x128xbf16>
    %c0_20 = arith.constant 0 : index
    %c0_21 = arith.constant 0 : index
    %34 = vector.load %arg4[%c0_20, %c0_21] : memref<128x128xbf16, #tpu.memory_space<vmem>>, vector<128x128xbf16>
    %cst_22 = arith.constant dense<0.000000e+00> : vector<8x128xf32>
    %35 = tpu.matmul %33, %34, %cst_22 {dimension_numbers = #tpu.dot_dimension_numbers<[1], [0], [0], [1], [0, 0, 1, 1], [], []>} : vector<8x128xbf16>, vector<128x128xbf16>, vector<8x128xf32> -> vector<8x128xf32>
    %c3 = arith.constant 3 : index
    %c0_23 = arith.constant 0 : index
    %36 = vector.load %arg5[%c3, %c0_23] : memref<4x128xf32, #tpu.memory_space<vmem>>, vector<1x128xf32>
    %37 = vector.broadcast %36 : vector<1x128xf32> to vector<8x128xf32>
    %38 = arith.addf %35, %37 : vector<8x128xf32>
    %c0_24 = arith.constant 0 : index
    %c0_25 = arith.constant 0 : index
    %39 = vector.load %arg6[%c0_24, %c0_25] : memref<8x128xf32, #tpu.memory_space<vmem>>, vector<8x128xf32>
    tpu.vector_store %arg6[%c0_24, %c0_25], %38 {strides = array<i32>} : memref<8x128xf32, #tpu.memory_space<vmem>>, vector<8x128xf32>,
    return
  }
  func.func @transform_0(%arg0: i32) -> (i32, i32) {
    %c0_i32 = arith.constant 0 : i32
    %c0_i32_0 = arith.constant 0 : i32
    return %arg0, %c0_i32 : i32, i32
  }
  func.func @transform_1(%arg0: i32) -> (i32, i32) {
    %c0_i32 = arith.constant 0 : i32
    %c0_i32_0 = arith.constant 0 : i32
    %c0_i32_1 = arith.constant 0 : i32
    return %c0_i32, %c0_i32_0 : i32, i32
  }
  func.func @transform_2(%arg0: i32) -> (i32, i32, i32) {
    %c0_i32 = arith.constant 0 : i32
    %c0_i32_0 = arith.constant 0 : i32
    %c0_i32_1 = arith.constant 0 : i32
    %c0_i32_2 = arith.constant 0 : i32
    return %c0_i32, %c0_i32_0, %c0_i32_1 : i32, i32, i32
  }
  func.func @transform_3(%arg0: i32) -> (i32, i32) {
    %c0_i32 = arith.constant 0 : i32
    %c0_i32_0 = arith.constant 0 : i32
    %c0_i32_1 = arith.constant 0 : i32
    return %c0_i32, %c0_i32_0 : i32, i32
  }
  func.func @transform_4(%arg0: i32) -> (i32, i32) {
    %c0_i32 = arith.constant 0 : i32
    %c0_i32_0 = arith.constant 0 : i32
    %c0_i32_1 = arith.constant 0 : i32
    return %c0_i32, %c0_i32_0 : i32, i32
  }
  func.func @transform_5(%arg0: i32) -> (i32, i32) {
    %c0_i32 = arith.constant 0 : i32
    %c0_i32_0 = arith.constant 0 : i32
    return %arg0, %c0_i32 : i32, i32
  }
}

</mosaic_0001>

<llo_original>
// kernel: tpu_custom_call.1
$region0: #{tpu_custom_call.1}
  #allocation0 [shape = 'u32[]', space=smem, size = 0x4, offset = 0x4, fixed_abs, tag = 'smem constant byte address 0x4 - core index']
  #allocation1 [shape = 'u32[72,128]{1,0:T(1,128)}', space=vmem, size = 0x9000, scoped, tag = 'internal scratch']
  %s0 = inlined_call_operand.hbm [shape: f32[8,8], index: 0, kind: input, shape index: {}]
  %s1 = inlined_call_operand.hbm [shape: bf16[8,128], index: 1, kind: input, shape index: {}]
  %s2 = inlined_call_operand.hbm [shape: bf16[2,128,128], index: 2, kind: input, shape index: {}]
  %s3 = inlined_call_operand.hbm [shape: bf16[128,128], index: 3, kind: input, shape index: {}]
  %s4 = inlined_call_operand.hbm [shape: f32[4,128], index: 4, kind: input, shape index: {}]
  %s5 = inlined_call_operand.hbm [shape: f32[8,128], index: 5, kind: output, shape index: {}]
  %s6 = sld [smem:[#allocation0]]
  $region50: #{tpu_custom_call.1} parent=0
    _
  %s8 = ssub.s32 1, %s6
  %s9 = scalar_select 0, %s8, %s6
  $region1: #{tpu_custom_call.1} parent=0
    #allocation2 [shape = 'u8[4096]{0}', space=vmem, size = 0x1000, scoped, tag = 'input window, operand 0, single buffered']
    #allocation3 [shape = 's32[1]{0}', space=sflag, size = 0x4, scoped, tag = 'scoped memory for tpu_custom_call.1']
    #allocation4 [shape = 's32[1]{0}', space=sflag, size = 0x4, scoped, tag = 'scoped memory for tpu_custom_call.1']
    #allocation5 [shape = 'u8[2048]{0}', space=vmem, size = 0x800, scoped, tag = 'input window, operand 1, single buffered']
    #allocation6 [shape = 's32[1]{0}', space=sflag, size = 0x4, scoped, tag = 'scoped memory for tpu_custom_call.1']
    #allocation7 [shape = 'u8[65536]{0}', space=vmem, size = 0x10000, scoped, tag = 'input window, operand 2, single buffered']
    #allocation8 [shape = 'u8[32768]{0}', space=vmem, size = 0x8000, scoped, tag = 'input window, operand 3, single buffered']
    #allocation9 [shape = 's32[1]{0}', space=sflag, size = 0x4, scoped, tag = 'scoped memory for tpu_custom_call.1']
    #allocation10 [shape = 'u8[2048]{0}', space=vmem, size = 0x800, scoped, tag = 'input window, operand 4, single buffered']
    #allocation11 [shape = 'u8[4096]{0}', space=vmem, size = 0x1000, scoped, tag = 'output window, operand 0, single buffered']
    %10 = vsyncpa [#allocation3], 0
    %11 = vsyncpa [#allocation6], 0
    %12 = vsyncpa [#allocation9], 0
    %13 = vsyncpa [#allocation4], 0
    // Predicated region
    $region2: #{tpu_custom_call.1} parent=1 // pred_check
      _
    $region3: #{tpu_custom_call.1} parent=1 // pred_check_branch
      %15 = sbr.rel (0) target = $region5
    $region4: #{tpu_custom_call.1} parent=1 // pred_region
      %17 = vsyncadd [#allocation3], 0
      %s19 = sshll.u32 %s0, 4
      %s20 = int_to_ptr.hbm [resolvable:$true] %s19
      %s21 = sshll.u32 [#allocation2], 4
      %s22 = int_to_ptr.vmem [resolvable:$true] %s21
      %24 = dma.hbm_to_vmem [thread:$0]  %s20, 128, %s22, [#allocation3]
    $region5: #{tpu_custom_call.1} parent=1 // pred_fallthru
      _
    // Predicated region
    $region6: #{tpu_custom_call.1} parent=1 // pred_check
      _
    $region7: #{tpu_custom_call.1} parent=1 // pred_check_branch
      %26 = sbr.rel (0) target = $region9
    $region8: #{tpu_custom_call.1} parent=1 // pred_region
      %28 = vsyncadd [#allocation6], 0
      %s30 = sshll.u32 %s1, 4
      %s31 = int_to_ptr.hbm [resolvable:$true] %s30
      %s32 = sshll.u32 [#allocation5], 4
      %s33 = int_to_ptr.vmem [resolvable:$true] %s32
      %35 = dma.hbm_to_vmem [thread:$0]  %s31, 64, %s33, [#allocation6]
    $region9: #{tpu_custom_call.1} parent=1 // pred_fallthru
      _
    // Predicated region
    $region10: #{tpu_custom_call.1} parent=1 // pred_check
      _
    $region11: #{tpu_custom_call.1} parent=1 // pred_check_branch
      %37 = sbr.rel (0) target = $region13
    $region12: #{tpu_custom_call.1} parent=1 // pred_region
      %39 = vsyncadd [#allocation6], 0
      %s40 = sshll.u32 %s2, 4
      %s41 = int_to_ptr.hbm [resolvable:$true] %s40
      %s42 = sshll.u32 [#allocation7], 4
      %s43 = int_to_ptr.vmem [resolvable:$true] %s42
      %48 = dma.hbm_to_vmem [thread:$0]  %s41, 2048, %s43, [#allocation6], 64, 64, 4
    $region13: #{tpu_custom_call.1} parent=1 // pred_fallthru
      _
    // Predicated region
    $region14: #{tpu_custom_call.1} parent=1 // pred_check
      _
    $region15: #{tpu_custom_call.1} parent=1 // pred_check_branch
      %50 = sbr.rel (0) target = $region17
    $region16: #{tpu_custom_call.1} parent=1 // pred_region
      %52 = vsyncadd [#allocation9], 0
      %s53 = sshll.u32 %s3, 4
      %s54 = int_to_ptr.hbm [resolvable:$true] %s53
      %s55 = sshll.u32 [#allocation8], 4
      %s56 = int_to_ptr.vmem [resolvable:$true] %s55
      %61 = dma.hbm_to_vmem [thread:$0]  %s54, 1024, %s56, [#allocation9], 64, 64, 4
    $region17: #{tpu_custom_call.1} parent=1 // pred_fallthru
      _
    // Predicated region
    $region18: #{tpu_custom_call.1} parent=1 // pred_check
      _
    $region19: #{tpu_custom_call.1} parent=1 // pred_check_branch
      %63 = sbr.rel (0) target = $region21
    $region20: #{tpu_custom_call.1} parent=1 // pred_region
      %65 = vsyncadd [#allocation9], 0
      %s67 = sshll.u32 %s4, 4
      %s68 = int_to_ptr.hbm [resolvable:$true] %s67
      %s69 = sshll.u32 [#allocation10], 4
      %s70 = int_to_ptr.vmem [resolvable:$true] %s69
      %72 = dma.hbm_to_vmem [thread:$0]  %s68, 64, %s70, [#allocation9]
    $region21: #{tpu_custom_call.1} parent=1 // pred_fallthru
      _
    // Predicated region
    $region22: #{tpu_custom_call.1} parent=1 // pred_check
      _
    $region23: #{tpu_custom_call.1} parent=1 // pred_check_branch
      %74 = sbr.rel (0) target = $region25
    $region24: #{tpu_custom_call.1} parent=1 // pred_region
      %76 = dma.done [#allocation3], 128
    $region25: #{tpu_custom_call.1} parent=1 // pred_fallthru
      _
    // Predicated region
    $region26: #{tpu_custom_call.1} parent=1 // pred_check
      _
    $region27: #{tpu_custom_call.1} parent=1 // pred_check_branch
      %78 = sbr.rel (0) target = $region29
    $region28: #{tpu_custom_call.1} parent=1 // pred_region
      %80 = dma.done [#allocation6], 64
    $region29: #{tpu_custom_call.1} parent=1 // pred_fallthru
      _
    // Predicated region
    $region30: #{tpu_custom_call.1} parent=1 // pred_check
      _
    $region31: #{tpu_custom_call.1} parent=1 // pred_check_branch
      %82 = sbr.rel (0) target = $region33
    $region32: #{tpu_custom_call.1} parent=1 // pred_region
      %84 = dma.done [#allocation6], 2048
    $region33: #{tpu_custom_call.1} parent=1 // pred_fallthru
      _
    // Predicated region
    $region34: #{tpu_custom_call.1} parent=1 // pred_check
      _
    $region35: #{tpu_custom_call.1} parent=1 // pred_check_branch
      %86 = sbr.rel (0) target = $region37
    $region36: #{tpu_custom_call.1} parent=1 // pred_region
      %88 = dma.done [#allocation9], 1024
    $region37: #{tpu_custom_call.1} parent=1 // pred_fallthru
      _
    // Predicated region
    $region38: #{tpu_custom_call.1} parent=1 // pred_check
      _
    $region39: #{tpu_custom_call.1} parent=1 // pred_check_branch
      %90 = sbr.rel (0) target = $region41
    $region40: #{tpu_custom_call.1} parent=1 // pred_region
      %92 = dma.done [#allocation9], 64
    $region41: #{tpu_custom_call.1} parent=1 // pred_fallthru
      _
    %v94 = vld [vmem:[#allocation2] sm:$0xff]
    %v95 = vpack.c.bf16 %v94, %v94
    %v96 = vld [vmem:[#allocation5] sm:$0xf]
    %v97 = vld [vmem:[#allocation10] sm:$0x1]
    %v98 = vperm.slane %v97, 0
    %vm99 = vcmask 64512
    %v101 = vsel %vm99, %v95, 0
    %vm103 = vcmask 1043456
    %v105 = vsel %vm103, %v96, 0
    %107 = vmatpush.bf16.msra.mxu0 0
    %108 = vmatpush.bf16.msra.mxu0 0
    %109 = vmatpush.bf16.msra.mxu0 0
    %110 = vmatpush.bf16.msra.mxu0 0
    %111 = vmatpush.bf16.msra.mxu0 0
    %112 = vmatpush.bf16.msra.mxu0 0
    %113 = vmatpush.bf16.msra.mxu0 0
    %114 = vmatpush.bf16.msra.mxu0 %v105
    %115 = vmatmul.bf16.gmra.mxu0 %v101
    %v116 = vpop.f32.mrf.mxu0
    %v117 = vadd.f32 %v98, %v116
    %v118 = vpop.f32.mrf.mxu0
    %119 = vdwg.mxu0
    %vm120 = vcmp.gt.f32.partialorder %v117, 0.0
    %v121 = vmul.f32 %v117, 0.01
    %v122 = vsel %vm120, %v117, %v121
    %v123 = vpack.c.bf16 %v122, %v122
    %v124 = vld [vmem:[#allocation7] sm:$0xf]
    %v125 = vld [vmem:[#allocation7 + $0x4] sm:$0xf]
    %v126 = vld [vmem:[#allocation7 + $0x8] sm:$0xf]
    %v127 = vld [vmem:[#allocation7 + $0xc] sm:$0xf]
    %v128 = vld [vmem:[#allocation7 + $0x10] sm:$0xf]
    %v129 = vld [vmem:[#allocation7 + $0x14] sm:$0xf]
    %v130 = vld [vmem:[#allocation7 + $0x18] sm:$0xf]
    %v131 = vld [vmem:[#allocation7 + $0x1c] sm:$0xf]
    %v132 = vld [vmem:[#allocation7 + $0x20] sm:$0xf]
    %v133 = vld [vmem:[#allocation7 + $0x24] sm:$0xf]
    %v134 = vld [vmem:[#allocation7 + $0x28] sm:$0xf]
    %v135 = vld [vmem:[#allocation7 + $0x2c] sm:$0xf]
    %v136 = vld [vmem:[#allocation7 + $0x30] sm:$0xf]
    %v137 = vld [vmem:[#allocation7 + $0x34] sm:$0xf]
    %v138 = vld [vmem:[#allocation7 + $0x38] sm:$0xf]
    %v139 = vld [vmem:[#allocation7 + $0x3c] sm:$0xf]
    %v140 = vld [vmem:[#allocation10 + $0x1] sm:$0x1]
    %v141 = vperm.slane %v140, 0
    %v158 = vunpack.c.l.b16 %v124
    %v159 = vunpack.c.l.b16 %v125
    %v160 = vunpack.c.l.b16 %v126
    %v161 = vunpack.c.l.b16 %v127
    %v162 = vunpack.c.l.b16 %v128
    %v163 = vunpack.c.l.b16 %v129
    %v164 = vunpack.c.l.b16 %v130
    %v165 = vunpack.c.l.b16 %v131
    %v166 = vunpack.c.l.b16 %v132
    %v167 = vunpack.c.l.b16 %v133
    %v168 = vunpack.c.l.b16 %v134
    %v169 = vunpack.c.l.b16 %v135
    %v170 = vunpack.c.l.b16 %v136
    %v171 = vunpack.c.l.b16 %v137
    %v172 = vunpack.c.l.b16 %v138
    %v173 = vunpack.c.l.b16 %v139
    %v174 = vpack.c.b16 %v159, %v158
    %v175 = vpack.c.b16 %v161, %v160
    %v176 = vpack.c.b16 %v163, %v162
    %v177 = vpack.c.b16 %v165, %v164
    %v178 = vpack.c.b16 %v167, %v166
    %v179 = vpack.c.b16 %v169, %v168
    %v180 = vpack.c.b16 %v171, %v170
    %v181 = vpack.c.b16 %v173, %v172
    %190 = vmatpush.bf16.msra.mxu0 %v181
    %191 = vmatpush.bf16.msra.mxu0 %v180
    %192 = vmatpush.bf16.msra.mxu0 %v179
    %193 = vmatpush.bf16.msra.mxu0 %v178
    %194 = vmatpush.bf16.msra.mxu0 %v177
    %195 = vmatpush.bf16.msra.mxu0 %v176
    %196 = vmatpush.bf16.msra.mxu0 %v175
    %197 = vmatpush.bf16.msra.mxu0 %v174
    %198 = vmatmul.bf16.gmra.mxu0 %v123
    %v199 = vpop.f32.mrf.mxu0
    %v200 = vadd.f32 %v141, %v199
    %v201 = vpop.f32.mrf.mxu0
    %202 = vdwg.mxu0
    %vm203 = vcmp.gt.f32.partialorder %v200, 0.0
    %v204 = vmul.f32 %v200, 0.22916667
    %v205 = vsel %vm203, %v200, %v204
    %v206 = vpack.c.bf16 %v205, %v205
    %s207 = scalar_lea.vmem [#allocation7], 64
    %v208 = vld [vmem:[%s207] sm:$0xf]
    %v209 = vld [vmem:[%s207 + $0x4] sm:$0xf]
    %v210 = vld [vmem:[%s207 + $0x8] sm:$0xf]
    %v211 = vld [vmem:[%s207 + $0xc] sm:$0xf]
    %v212 = vld [vmem:[%s207 + $0x10] sm:$0xf]
    %v213 = vld [vmem:[%s207 + $0x14] sm:$0xf]
    %v214 = vld [vmem:[%s207 + $0x18] sm:$0xf]
    %v215 = vld [vmem:[%s207 + $0x1c] sm:$0xf]
    %v216 = vld [vmem:[%s207 + $0x20] sm:$0xf]
    %v217 = vld [vmem:[%s207 + $0x24] sm:$0xf]
    %v218 = vld [vmem:[%s207 + $0x28] sm:$0xf]
    %v219 = vld [vmem:[%s207 + $0x2c] sm:$0xf]
    %v220 = vld [vmem:[%s207 + $0x30] sm:$0xf]
    %v221 = vld [vmem:[%s207 + $0x34] sm:$0xf]
    %v222 = vld [vmem:[%s207 + $0x38] sm:$0xf]
    %v223 = vld [vmem:[%s207 + $0x3c] sm:$0xf]
    %v224 = vld [vmem:[#allocation10 + $0x2] sm:$0x1]
    %v225 = vperm.slane %v224, 0
    %v242 = vunpack.c.l.b16 %v208
    %v243 = vunpack.c.l.b16 %v209
    %v244 = vunpack.c.l.b16 %v210
    %v245 = vunpack.c.l.b16 %v211
    %v246 = vunpack.c.l.b16 %v212
    %v247 = vunpack.c.l.b16 %v213
    %v248 = vunpack.c.l.b16 %v214
    %v249 = vunpack.c.l.b16 %v215
    %v250 = vunpack.c.l.b16 %v216
    %v251 = vunpack.c.l.b16 %v217
    %v252 = vunpack.c.l.b16 %v218
    %v253 = vunpack.c.l.b16 %v219
    %v254 = vunpack.c.l.b16 %v220
    %v255 = vunpack.c.l.b16 %v221
    %v256 = vunpack.c.l.b16 %v222
    %v257 = vunpack.c.l.b16 %v223
    %v258 = vpack.c.b16 %v243, %v242
    %v259 = vpack.c.b16 %v245, %v244
    %v260 = vpack.c.b16 %v247, %v246
    %v261 = vpack.c.b16 %v249, %v248
    %v262 = vpack.c.b16 %v251, %v250
    %v263 = vpack.c.b16 %v253, %v252
    %v264 = vpack.c.b16 %v255, %v254
    %v265 = vpack.c.b16 %v257, %v256
    %274 = vmatpush.bf16.msra.mxu0 %v265
    %275 = vmatpush.bf16.msra.mxu0 %v264
    %276 = vmatpush.bf16.msra.mxu0 %v263
    %277 = vmatpush.bf16.msra.mxu0 %v262
    %278 = vmatpush.bf16.msra.mxu0 %v261
    %279 = vmatpush.bf16.msra.mxu0 %v260
    %280 = vmatpush.bf16.msra.mxu0 %v259
    %281 = vmatpush.bf16.msra.mxu0 %v258
    %282 = vmatmul.bf16.gmra.mxu0 %v206
    %v283 = vpop.f32.mrf.mxu0
    %v284 = vadd.f32 %v225, %v283
    %v285 = vpop.f32.mrf.mxu0
    %286 = vdwg.mxu0
    %v287 = vmax.f32 %v284, 0.0
    %v288 = vpack.c.bf16 %v287, %v287
    %v289 = vld [vmem:[#allocation8] sm:$0xf]
    %v290 = vld [vmem:[#allocation8 + $0x4] sm:$0xf]
    %v291 = vld [vmem:[#allocation8 + $0x8] sm:$0xf]
    %v292 = vld [vmem:[#allocation8 + $0xc] sm:$0xf]
    %v293 = vld [vmem:[#allocation8 + $0x10] sm:$0xf]
    %v294 = vld [vmem:[#allocation8 + $0x14] sm:$0xf]
    %v295 = vld [vmem:[#allocation8 + $0x18] sm:$0xf]
    %v296 = vld [vmem:[#allocation8 + $0x1c] sm:$0xf]
    %v297 = vld [vmem:[#allocation8 + $0x20] sm:$0xf]
    %v298 = vld [vmem:[#allocation8 + $0x24] sm:$0xf]
    %v299 = vld [vmem:[#allocation8 + $0x28] sm:$0xf]
    %v300 = vld [vmem:[#allocation8 + $0x2c] sm:$0xf]
    %v301 = vld [vmem:[#allocation8 + $0x30] sm:$0xf]
    %v302 = vld [vmem:[#allocation8 + $0x34] sm:$0xf]
    %v303 = vld [vmem:[#allocation8 + $0x38] sm:$0xf]
    %v304 = vld [vmem:[#allocation8 + $0x3c] sm:$0xf]
    %v305 = vld [vmem:[#allocation10 + $0x3] sm:$0x1]
    %v306 = vperm.slane %v305, 0
    %v323 = vunpack.c.l.b16 %v289
    %v324 = vunpack.c.l.b16 %v290
    %v325 = vunpack.c.l.b16 %v291
    %v326 = vunpack.c.l.b16 %v292
    %v327 = vunpack.c.l.b16 %v293
    %v328 = vunpack.c.l.b16 %v294
    %v329 = vunpack.c.l.b16 %v295
    %v330 = vunpack.c.l.b16 %v296
    %v331 = vunpack.c.l.b16 %v297
    %v332 = vunpack.c.l.b16 %v298
    %v333 = vunpack.c.l.b16 %v299
    %v334 = vunpack.c.l.b16 %v300
    %v335 = vunpack.c.l.b16 %v301
    %v336 = vunpack.c.l.b16 %v302
    %v337 = vunpack.c.l.b16 %v303
    %v338 = vunpack.c.l.b16 %v304
    %v339 = vpack.c.b16 %v324, %v323
    %v340 = vpack.c.b16 %v326, %v325
    %v341 = vpack.c.b16 %v328, %v327
    %v342 = vpack.c.b16 %v330, %v329
    %v343 = vpack.c.b16 %v332, %v331
    %v344 = vpack.c.b16 %v334, %v333
    %v345 = vpack.c.b16 %v336, %v335
    %v346 = vpack.c.b16 %v338, %v337
    %355 = vmatpush.bf16.msra.mxu0 %v346
    %356 = vmatpush.bf16.msra.mxu0 %v345
    %357 = vmatpush.bf16.msra.mxu0 %v344
    %358 = vmatpush.bf16.msra.mxu0 %v343
    %359 = vmatpush.bf16.msra.mxu0 %v342
    %360 = vmatpush.bf16.msra.mxu0 %v341
    %361 = vmatpush.bf16.msra.mxu0 %v340
    %362 = vmatpush.bf16.msra.mxu0 %v339
    %363 = vmatmul.bf16.gmra.mxu0 %v288
    %v364 = vpop.f32.mrf.mxu0
    %v365 = vadd.f32 %v306, %v364
    %v366 = vpop.f32.mrf.mxu0
    %367 = vdwg.mxu0
    %368 = vst [vmem:[#allocation11] sm:$0xff] %v365
    // Predicated region
    $region42: #{tpu_custom_call.1} parent=1 // pred_check
      _
    $region43: #{tpu_custom_call.1} parent=1 // pred_check_branch
      %370 = sbr.rel (0) target = $region45
    $region44: #{tpu_custom_call.1} parent=1 // pred_region
      %372 = vsyncadd [#allocation4], 0
      %s374 = sshll.u32 [#allocation11], 4
      %s375 = int_to_ptr.vmem [resolvable:$true] %s374
      %s376 = sshll.u32 %s5, 4
      %s377 = int_to_ptr.hbm [resolvable:$true] %s376
      %379 = dma.vmem_to_hbm [thread:$0]  %s375, 128, %s377, [#allocation4]
    $region45: #{tpu_custom_call.1} parent=1 // pred_fallthru
      _
    // Predicated region
    $region46: #{tpu_custom_call.1} parent=1 // pred_check
      _
    $region47: #{tpu_custom_call.1} parent=1 // pred_check_branch
      %381 = sbr.rel (0) target = $region49
    $region48: #{tpu_custom_call.1} parent=1 // pred_region
      %383 = dma.done [#allocation4], 128
    $region49: #{tpu_custom_call.1} parent=1 // pred_fallthru
      _
    %384 = vsyncpa [#allocation3], 1
    %385 = vsyncpa [#allocation6], 1
    %386 = vsyncpa [#allocation9], 1
    %387 = vsyncpa [#allocation4], 1

</llo_original>
